<compile_context>
chip_gen: v5e
topology: v5e:2x2
jax: 0.10.0
libtpu: 0.0.40
codegen_flags: <defaults>
</compile_context>

<pallas_src>
import functools

import jax
import jax.numpy as jnp
from jax.experimental import pallas as pl
from jax.experimental.pallas import tpu as pltpu


# ---------------------------------------------------------------------------
# Kernels
# ---------------------------------------------------------------------------
def _gather_resident_kernel(labels_ref, table_ref, out_ref):
    """Gather TB rows of the VMEM-resident table into one dense output tile.

    labels_ref : SMEM (B_pad,) int32   (scalar prefetch, full array)
    table_ref  : VMEM (C, H_pad)       (constant index_map -> DMA'd once)
    out_ref    : VMEM (TB, H_pad)      (dense tile, one per grid step)
    """
    tile = pl.program_id(0)
    tb = out_ref.shape[0]
    base = tile * tb
    # Static unroll over the tile: TB dynamic-sublane row copies from the
    # resident table; the HBM writeback is the single dense (TB, H) block.
    for r in range(tb):
        lbl = labels_ref[base + r]
        out_ref[pl.ds(r, 1), :] = table_ref[pl.ds(lbl, 1), :]


def _gather_row_kernel(labels_ref, table_row_ref, out_ref):
    """Fallback: one (1, H) table row per step via data-dependent index_map."""
    del labels_ref
    out_ref[...] = table_row_ref[...]


# ---------------------------------------------------------------------------
# Wrapper
# ---------------------------------------------------------------------------
def _choose_tile(batch):
    # Prefer a tile that divides the batch exactly (no padding), else the
    # largest tile <= batch, else the minimum sublane-dense tile of 8.
    for tb in (64, 32, 16, 8):
        if batch % tb == 0:
            return tb
    for tb in (64, 32, 16, 8):
        if batch >= tb:
            return tb
    return 8


@functools.partial(jax.jit, static_argnames=("max_resident_bytes",))
def embedding_gather(labels, table, *, max_resident_bytes=48 * 1024 * 1024):
    """Pallas embedding lookup: out[i, :] = table[labels[i], :]."""
    B = labels.shape[0]
    C, H = table.shape

    # Clamp to valid rows so no label can ever drive an OOB VMEM access/DMA.
    labels = jnp.clip(labels.astype(jnp.int32), 0, C - 1)

    # Lane-dense hidden dim (multiple of 128).
    H_pad = ((H + 127) // 128) * 128
    if H_pad != H:
        table = jnp.pad(table, ((0, 0), (0, H_pad - H)))

    # Sublane-dense batch tiling (multiple of 8).
    TB = _choose_tile(B)
    B_pad = ((B + TB - 1) // TB) * TB
    if B_pad != B:
        labels = jnp.pad(labels, (0, B_pad - B))

    itemsize = jnp.dtype(table.dtype).itemsize
    table_bytes = C * H_pad * itemsize
    out_buf_bytes = 2 * TB * H_pad * itemsize  # double-buffered output tile
    needed = table_bytes + out_buf_bytes + (1 << 20)

    if needed <= max_resident_bytes:
        # Fast path: table resident in VMEM, TB labels gathered per grid step.
        vmem_limit = int(min(max(needed + (4 << 20), 32 << 20), 56 << 20))
        out = pl.pallas_call(
            _gather_resident_kernel,
            out_shape=jax.ShapeDtypeStruct((B_pad, H_pad), table.dtype),
            grid_spec=pltpu.PrefetchScalarGridSpec(
                num_scalar_prefetch=1,          # labels -> SMEM
                grid=(B_pad // TB,),
                in_specs=[
                    # Constant block index -> whole table DMA'd once, stays put.
                    pl.BlockSpec((C, H_pad), lambda i, labels_ref: (0, 0)),
                ],
                out_specs=pl.BlockSpec((TB, H_pad), lambda i, labels_ref: (i, 0)),
            ),
            compiler_params=pltpu.CompilerParams(
                dimension_semantics=("parallel",),   # disjoint tiles -> v7x 2xTC
                vmem_limit_bytes=vmem_limit,
            ),
        )(labels, table)
    else:
        # Large-table fallback: data-dependent per-row fetch (table stays in HBM).
        out = pl.pallas_call(
            _gather_row_kernel,
            out_shape=jax.ShapeDtypeStruct((B_pad, H_pad), table.dtype),
            grid_spec=pltpu.PrefetchScalarGridSpec(
                num_scalar_prefetch=1,
                grid=(B_pad,),
                in_specs=[
                    pl.BlockSpec((1, H_pad), lambda i, labels_ref: (labels_ref[i], 0)),
                ],
                out_specs=pl.BlockSpec((1, H_pad), lambda i, labels_ref: (i, 0)),
            ),
            compiler_params=pltpu.CompilerParams(
                dimension_semantics=("arbitrary",),
            ),
        )(labels, table)

    if B_pad != B or H_pad != H:
        out = out[:B, :H]
    return out


# ---------------------------------------------------------------------------
# Module port
# ---------------------------------------------------------------------------
class LabelEmbedder:
    """JAX/Pallas port of the PyTorch LabelEmbedder."""

    def __init__(self, num_classes, hidden_size, dropout_prob, key):
        use_cfg_embedding = int(dropout_prob > 0)
        # nn.Embedding default init: weight ~ N(0, 1); deterministic via key.
        # TODO(synk): optionally store the table in bfloat16 to halve HBM/VMEM
        # traffic; kept float32 here to match nn.Embedding semantics exactly.
        self.embedding_table = jax.random.normal(
            key, (num_classes + use_cfg_embedding, hidden_size), dtype=jnp.float32
        )
        self.num_classes = num_classes
        self.dropout_prob = dropout_prob

    def token_drop(self, labels, rng, force_drop_ids=None):
        if force_drop_ids is None:
            drop_ids = (
                jax.random.uniform(rng, (labels.shape[0],)) < self.dropout_prob
            )
        else:
            drop_ids = force_drop_ids == 1
        return jnp.where(drop_ids, self.num_classes, labels)

    def __call__(self, labels, train, rng=None, force_drop_ids=None):
        use_dropout = self.dropout_prob > 0
        if (train and use_dropout) or (force_drop_ids is not None):
            labels = self.token_drop(labels, rng, force_drop_ids)
        labels = labels.astype(jnp.int32)
        return embedding_gather(labels, self.embedding_table)


# ---------------------------------------------------------------------------
# Demo / self-check
# ---------------------------------------------------------------------------
if __name__ == "__main__":
    key = jax.random.PRNGKey(0)
    k_table, k_labels, k_drop, k_table2, k_labels2 = jax.random.split(key, 5)

    # --- Test 1: aligned shapes (H multiple of 128, B multiple of 8) ---------
    num_classes = 10
    hidden_size = 128
    dropout_prob = 0.1
    batch = 8

    embedder = LabelEmbedder(num_classes, hidden_size, dropout_prob, k_table)
    labels = jax.random.randint(k_labels, (batch,), 0, num_classes, dtype=jnp.int32)

    # Eval-mode forward (no dropout path), like forward(labels, train=False).
    emb_eval = jax.block_until_ready(embedder(labels, train=False))
    # Train-mode forward with deterministic token drop rng.
    emb_train = jax.block_until_ready(embedder(labels, train=True, rng=k_drop))

    ref = jnp.take(embedder.embedding_table, labels, axis=0)
    assert emb_eval.shape == (batch, hidden_size)
    assert emb_train.shape == (batch, hidden_size)
    assert jnp.allclose(emb_eval, ref, atol=0, rtol=0)

    # --- Test 2: unaligned shapes exercise the pad/slice paths ---------------
    num_classes2, hidden2, batch2 = 7, 96, 5
    embedder2 = LabelEmbedder(num_classes2, hidden2, 0.0, k_table2)
    labels2 = jax.random.randint(k_labels2, (batch2,), 0, num_classes2, dtype=jnp.int32)
    emb2 = jax.block_until_ready(embedder2(labels2, train=False))
    ref2 = jnp.take(embedder2.embedding_table, labels2, axis=0)
    assert emb2.shape == (batch2, hidden2)
    assert jnp.allclose(emb2, ref2, atol=0, rtol=0)

    print("KERNEL_OK")
</pallas_src>

<mosaic_0001>
module attributes {stable_mosaic.version = 11 : i64} {
  func.func @_gather_resident_kernel(%arg0: i32, %arg1: memref<8xi32, #tpu.memory_space<smem>>, %arg2: memref<11x128xf32, #tpu.memory_space<vmem>>, %arg3: memref<8x128xf32, #tpu.memory_space<vmem>>) attributes {dimension_semantics = [#tpu.dimension_semantics<parallel>], iteration_bounds = array<i64: 1>, scalar_prefetch = 1 : i64, scratch_operands = 0 : i64, tpu.core_type = #tpu.core_type<tc>, window_params = [{pipeline_mode = #tpu.pipeline_mode<synchronous>, transform_indices = @transform_0, window_bounds = array<i64: 11, 128>}, {transform_indices = @transform_1, window_bounds = array<i64: 8, 128>}]} {
    %c8_i32 = arith.constant 8 : i32
    %0 = arith.muli %arg0, %c8_i32 : i32
    %c0_i32 = arith.constant 0 : i32
    %1 = arith.addi %0, %c0_i32 : i32
    %2 = arith.index_cast %1 : i32 to index
    %3 = memref.load %arg1[%2] : memref<8xi32, #tpu.memory_space<smem>>
    %4 = arith.index_cast %3 : i32 to index
    %c0 = arith.constant 0 : index
    %5 = vector.load %arg2[%4, %c0] : memref<11x128xf32, #tpu.memory_space<vmem>>, vector<1x128xf32>
    %c0_0 = arith.constant 0 : index
    %c0_1 = arith.constant 0 : index
    %6 = vector.load %arg3[%c0_0, %c0_1] : memref<8x128xf32, #tpu.memory_space<vmem>>, vector<1x128xf32>
    tpu.vector_store %arg3[%c0_0, %c0_1], %5 {strides = array<i32>} : memref<8x128xf32, #tpu.memory_space<vmem>>, vector<1x128xf32>,
    %c1_i32 = arith.constant 1 : i32
    %7 = arith.addi %0, %c1_i32 : i32
    %8 = arith.index_cast %7 : i32 to index
    %9 = memref.load %arg1[%8] : memref<8xi32, #tpu.memory_space<smem>>
    %10 = arith.index_cast %9 : i32 to index
    %c0_2 = arith.constant 0 : index
    %11 = vector.load %arg2[%10, %c0_2] : memref<11x128xf32, #tpu.memory_space<vmem>>, vector<1x128xf32>
    %c1 = arith.constant 1 : index
    %c0_3 = arith.constant 0 : index
    %12 = vector.load %arg3[%c1, %c0_3] : memref<8x128xf32, #tpu.memory_space<vmem>>, vector<1x128xf32>
    tpu.vector_store %arg3[%c1, %c0_3], %11 {strides = array<i32>} : memref<8x128xf32, #tpu.memory_space<vmem>>, vector<1x128xf32>,
    %c2_i32 = arith.constant 2 : i32
    %13 = arith.addi %0, %c2_i32 : i32
    %14 = arith.index_cast %13 : i32 to index
    %15 = memref.load %arg1[%14] : memref<8xi32, #tpu.memory_space<smem>>
    %16 = arith.index_cast %15 : i32 to index
    %c0_4 = arith.constant 0 : index
    %17 = vector.load %arg2[%16, %c0_4] : memref<11x128xf32, #tpu.memory_space<vmem>>, vector<1x128xf32>
    %c2 = arith.constant 2 : index
    %c0_5 = arith.constant 0 : index
    %18 = vector.load %arg3[%c2, %c0_5] : memref<8x128xf32, #tpu.memory_space<vmem>>, vector<1x128xf32>
    tpu.vector_store %arg3[%c2, %c0_5], %17 {strides = array<i32>} : memref<8x128xf32, #tpu.memory_space<vmem>>, vector<1x128xf32>,
    %c3_i32 = arith.constant 3 : i32
    %19 = arith.addi %0, %c3_i32 : i32
    %20 = arith.index_cast %19 : i32 to index
    %21 = memref.load %arg1[%20] : memref<8xi32, #tpu.memory_space<smem>>
    %22 = arith.index_cast %21 : i32 to index
    %c0_6 = arith.constant 0 : index
    %23 = vector.load %arg2[%22, %c0_6] : memref<11x128xf32, #tpu.memory_space<vmem>>, vector<1x128xf32>
    %c3 = arith.constant 3 : index
    %c0_7 = arith.constant 0 : index
    %24 = vector.load %arg3[%c3, %c0_7] : memref<8x128xf32, #tpu.memory_space<vmem>>, vector<1x128xf32>
    tpu.vector_store %arg3[%c3, %c0_7], %23 {strides = array<i32>} : memref<8x128xf32, #tpu.memory_space<vmem>>, vector<1x128xf32>,
    %c4_i32 = arith.constant 4 : i32
    %25 = arith.addi %0, %c4_i32 : i32
    %26 = arith.index_cast %25 : i32 to index
    %27 = memref.load %arg1[%26] : memref<8xi32, #tpu.memory_space<smem>>
    %28 = arith.index_cast %27 : i32 to index
    %c0_8 = arith.constant 0 : index
    %29 = vector.load %arg2[%28, %c0_8] : memref<11x128xf32, #tpu.memory_space<vmem>>, vector<1x128xf32>
    %c4 = arith.constant 4 : index
    %c0_9 = arith.constant 0 : index
    %30 = vector.load %arg3[%c4, %c0_9] : memref<8x128xf32, #tpu.memory_space<vmem>>, vector<1x128xf32>
    tpu.vector_store %arg3[%c4, %c0_9], %29 {strides = array<i32>} : memref<8x128xf32, #tpu.memory_space<vmem>>, vector<1x128xf32>,
    %c5_i32 = arith.constant 5 : i32
    %31 = arith.addi %0, %c5_i32 : i32
    %32 = arith.index_cast %31 : i32 to index
    %33 = memref.load %arg1[%32] : memref<8xi32, #tpu.memory_space<smem>>
    %34 = arith.index_cast %33 : i32 to index
    %c0_10 = arith.constant 0 : index
    %35 = vector.load %arg2[%34, %c0_10] : memref<11x128xf32, #tpu.memory_space<vmem>>, vector<1x128xf32>
    %c5 = arith.constant 5 : index
    %c0_11 = arith.constant 0 : index
    %36 = vector.load %arg3[%c5, %c0_11] : memref<8x128xf32, #tpu.memory_space<vmem>>, vector<1x128xf32>
    tpu.vector_store %arg3[%c5, %c0_11], %35 {strides = array<i32>} : memref<8x128xf32, #tpu.memory_space<vmem>>, vector<1x128xf32>,
    %c6_i32 = arith.constant 6 : i32
    %37 = arith.addi %0, %c6_i32 : i32
    %38 = arith.index_cast %37 : i32 to index
    %39 = memref.load %arg1[%38] : memref<8xi32, #tpu.memory_space<smem>>
    %40 = arith.index_cast %39 : i32 to index
    %c0_12 = arith.constant 0 : index
    %41 = vector.load %arg2[%40, %c0_12] : memref<11x128xf32, #tpu.memory_space<vmem>>, vector<1x128xf32>
    %c6 = arith.constant 6 : index
    %c0_13 = arith.constant 0 : index
    %42 = vector.load %arg3[%c6, %c0_13] : memref<8x128xf32, #tpu.memory_space<vmem>>, vector<1x128xf32>
    tpu.vector_store %arg3[%c6, %c0_13], %41 {strides = array<i32>} : memref<8x128xf32, #tpu.memory_space<vmem>>, vector<1x128xf32>,
    %c7_i32 = arith.constant 7 : i32
    %43 = arith.addi %0, %c7_i32 : i32
    %44 = arith.index_cast %43 : i32 to index
    %45 = memref.load %arg1[%44] : memref<8xi32, #tpu.memory_space<smem>>
    %46 = arith.index_cast %45 : i32 to index
    %c0_14 = arith.constant 0 : index
    %47 = vector.load %arg2[%46, %c0_14] : memref<11x128xf32, #tpu.memory_space<vmem>>, vector<1x128xf32>
    %c7 = arith.constant 7 : index
    %c0_15 = arith.constant 0 : index
    %48 = vector.load %arg3[%c7, %c0_15] : memref<8x128xf32, #tpu.memory_space<vmem>>, vector<1x128xf32>
    tpu.vector_store %arg3[%c7, %c0_15], %47 {strides = array<i32>} : memref<8x128xf32, #tpu.memory_space<vmem>>, vector<1x128xf32>,
    return
  }
  func.func @transform_0(%arg0: i32, %arg1: memref<8xi32, #tpu.memory_space<smem>>) -> (i32, i32) {
    %c0_i32 = arith.constant 0 : i32
    %c0_i32_0 = arith.constant 0 : i32
    %c0_i32_1 = arith.constant 0 : i32
    return %c0_i32, %c0_i32_0 : i32, i32
  }
  func.func @transform_1(%arg0: i32, %arg1: memref<8xi32, #tpu.memory_space<smem>>) -> (i32, i32) {
    %c0_i32 = arith.constant 0 : i32
    %c0_i32_0 = arith.constant 0 : i32
    return %arg0, %c0_i32 : i32, i32
  }
}

</mosaic_0001>

<llo_original>
// kernel: embedding_gather.1
$region0: #{embedding_gather.1}
  #allocation0 [shape = 'u32[]', space=smem, size = 0x4, offset = 0x4, fixed_abs, tag = 'smem constant byte address 0x4 - core index']
  #allocation1 [shape = 'u32[72,128]{1,0:T(1,128)}', space=vmem, size = 0x9000, scoped, tag = 'internal scratch']
  #allocation2 [shape = 's32[1]{0}', space=sflag, size = 0x4, scoped, tag = 'scoped memory for embedding_gather.1']
  #allocation3 [shape = 'u8[512]{0}', space=smem, size = 0x200, scoped, tag = 'prefetched SMEM operand 0']
  %s0 = inlined_call_operand.vmem [shape: s32[8], index: 0, kind: input, shape index: {}]
  %s1 = inlined_call_operand.hbm [shape: f32[11,128], index: 1, kind: input, shape index: {}]
  %s2 = inlined_call_operand.hbm [shape: f32[8,128], index: 2, kind: output, shape index: {}]
  %s3 = sld [smem:[#allocation0]]
  $region18: #{embedding_gather.1} parent=0
    _
  %s5 = ssub.s32 1, %s3
  %s6 = scalar_select 0, %s5, %s3
  %s8 = sshll.u32 %s0, 4
  %s9 = int_to_ptr.vmem [resolvable:$true] %s8
  %11 = dma.vmem_to_smem %s9, 16, [#allocation3], [#allocation2]
  %13 = dma.done [#allocation2], 16
  %14 = sfence
  $region1: #{embedding_gather.1} parent=0
    #allocation4 [shape = 'u8[8192]{0}', space=vmem, size = 0x2000, scoped, tag = 'input window, operand 1, single buffered']
    #allocation5 [shape = 's32[1]{0}', space=sflag, size = 0x4, scoped, tag = 'scoped memory for embedding_gather.1']
    #allocation6 [shape = 's32[1]{0}', space=sflag, size = 0x4, scoped, tag = 'scoped memory for embedding_gather.1']
    #allocation7 [shape = 'u8[4096]{0}', space=vmem, size = 0x1000, scoped, tag = 'output window, operand 0, single buffered']
    %15 = vsyncpa [#allocation5], 0
    %16 = vsyncpa [#allocation6], 0
    // Predicated region
    $region2: #{embedding_gather.1} parent=1 // pred_check
      _
    $region3: #{embedding_gather.1} parent=1 // pred_check_branch
      %18 = sbr.rel (0) target = $region5
    $region4: #{embedding_gather.1} parent=1 // pred_region
      %20 = vsyncadd [#allocation5], 0
      %s21 = sshll.u32 %s1, 4
      %s22 = int_to_ptr.hbm [resolvable:$true] %s21
      %s23 = sshll.u32 [#allocation4], 4
      %s24 = int_to_ptr.vmem [resolvable:$true] %s23
      %29 = dma.hbm_to_vmem [thread:$0]  %s22, 256, %s24, [#allocation5], 128, 128, 8
    $region5: #{embedding_gather.1} parent=1 // pred_fallthru
      _
    // Predicated region
    $region6: #{embedding_gather.1} parent=1 // pred_check
      _
    $region7: #{embedding_gather.1} parent=1 // pred_check_branch
      %31 = sbr.rel (0) target = $region9
    $region8: #{embedding_gather.1} parent=1 // pred_region
      %33 = dma.done [#allocation5], 256
    $region9: #{embedding_gather.1} parent=1 // pred_fallthru
      _
    %s34 = smul.u32 0, 8
    %s35 = sld [smem:[#allocation3 + %s34]]
    %s36 = scalar_lea.vmem [#allocation4], %s35
    %v37 = vld [vmem:[%s36] sm:$0x1]
    %38 = vst [vmem:[#allocation7] sm:$0x1] %v37
    %s39 = sadd.s32 %s34, 1
    %s40 = sld [smem:[#allocation3 + %s39]]
    %s41 = scalar_lea.vmem [#allocation4], %s40
    %v42 = vld [vmem:[%s41] sm:$0x1]
    %43 = vst [vmem:[#allocation7 + $0x1] sm:$0x1] %v42
    %s44 = sadd.s32 %s34, 2
    %s45 = sld [smem:[#allocation3 + %s44]]
    %s46 = scalar_lea.vmem [#allocation4], %s45
    %v47 = vld [vmem:[%s46] sm:$0x1]
    %48 = vst [vmem:[#allocation7 + $0x2] sm:$0x1] %v47
    %s49 = sadd.s32 %s34, 3
    %s50 = sld [smem:[#allocation3 + %s49]]
    %s51 = scalar_lea.vmem [#allocation4], %s50
    %v52 = vld [vmem:[%s51] sm:$0x1]
    %53 = vst [vmem:[#allocation7 + $0x3] sm:$0x1] %v52
    %s54 = sadd.s32 %s34, 4
    %s55 = sld [smem:[#allocation3 + %s54]]
    %s56 = scalar_lea.vmem [#allocation4], %s55
    %v57 = vld [vmem:[%s56] sm:$0x1]
    %58 = vst [vmem:[#allocation7 + $0x4] sm:$0x1] %v57
    %s59 = sadd.s32 %s34, 5
    %s60 = sld [smem:[#allocation3 + %s59]]
    %s61 = scalar_lea.vmem [#allocation4], %s60
    %v62 = vld [vmem:[%s61] sm:$0x1]
    %63 = vst [vmem:[#allocation7 + $0x5] sm:$0x1] %v62
    %s64 = sadd.s32 %s34, 6
    %s65 = sld [smem:[#allocation3 + %s64]]
    %s66 = scalar_lea.vmem [#allocation4], %s65
    %v67 = vld [vmem:[%s66] sm:$0x1]
    %68 = vst [vmem:[#allocation7 + $0x6] sm:$0x1] %v67
    %s69 = sadd.s32 %s34, 7
    %s70 = sld [smem:[#allocation3 + %s69]]
    %s71 = scalar_lea.vmem [#allocation4], %s70
    %v72 = vld [vmem:[%s71] sm:$0x1]
    %73 = vst [vmem:[#allocation7 + $0x7] sm:$0x1] %v72
    // Predicated region
    $region10: #{embedding_gather.1} parent=1 // pred_check
      _
    $region11: #{embedding_gather.1} parent=1 // pred_check_branch
      %75 = sbr.rel (0) target = $region13
    $region12: #{embedding_gather.1} parent=1 // pred_region
      %77 = vsyncadd [#allocation6], 0
      %s79 = sshll.u32 [#allocation7], 4
      %s80 = int_to_ptr.vmem [resolvable:$true] %s79
      %s81 = sshll.u32 %s2, 4
      %s82 = int_to_ptr.hbm [resolvable:$true] %s81
      %84 = dma.vmem_to_hbm [thread:$0]  %s80, 128, %s82, [#allocation6]
    $region13: #{embedding_gather.1} parent=1 // pred_fallthru
      _
    // Predicated region
    $region14: #{embedding_gather.1} parent=1 // pred_check
      _
    $region15: #{embedding_gather.1} parent=1 // pred_check_branch
      %86 = sbr.rel (0) target = $region17
    $region16: #{embedding_gather.1} parent=1 // pred_region
      %88 = dma.done [#allocation6], 128
    $region17: #{embedding_gather.1} parent=1 // pred_fallthru
      _
    %89 = vsyncpa [#allocation5], 1
    %90 = vsyncpa [#allocation6], 1

</llo_original>
